<compile_context>
chip_gen: v5e
topology: v5e:2x2
jax: 0.10.0
libtpu: 0.0.40
codegen_flags: <defaults>
</compile_context>

<pallas_src>
import functools

import jax
import jax.numpy as jnp
from jax.experimental import pallas as pl
from jax.experimental.pallas import tpu as pltpu

ALPHA = 0.25
GAMMA = 2.0
LANES = 128
MAX_BLOCK_ROWS = 2048   # 2048 * 128 * 4 B = 1 MiB per input block
NCORES = 2              # leading "parallel" axis (used by v7x megacore)


def _round_up(x, m):
    return (x + m - 1) // m * m


def _focal_kernel(preds_ref, targets_ref, acc_ref, *, alpha, gamma,
                  total_count, padded_count, block_rows):
    c = pl.program_id(0)          # core-parallel axis
    k = pl.program_id(1)          # reduction axis

    @pl.when(k == 0)
    def _():
        acc_ref[...] = jnp.zeros_like(acc_ref)

    x = preds_ref[...].astype(jnp.float32)
    t = targets_ref[...].astype(jnp.float32)

    # One shared exp(-|x|) feeds both the numerically-stable BCE and sigmoid.
    e = jnp.exp(-jnp.abs(x))
    bce = jnp.maximum(x, 0.0) - x * t + jnp.log1p(e)
    denom_inv = pl.reciprocal(1.0 + e)          # exact 1/(1+e)
    probas = jnp.where(x >= 0.0, denom_inv, e * denom_inv)   # == sigmoid(x)
    one_minus_p = 1.0 - probas

    if gamma == 2.0:
        # Explicit squares instead of pow (pow -> exp(g*log(x)) on the EUP).
        p_pow = probas * probas
        q_pow = one_minus_p * one_minus_p
    else:
        p_pow = probas ** gamma
        q_pow = one_minus_p ** gamma

    # Factored form: one multiply by bce instead of two.
    loss = bce * (t * alpha * q_pow + (1.0 - t) * p_pow)

    if padded_count != total_count:
        # Mask out the padded tail (only emitted when padding actually exists).
        row_start = (c * pl.num_programs(1) + k) * block_rows
        row_ids = jax.lax.broadcasted_iota(jnp.int32, loss.shape, 0)
        lane_ids = jax.lax.broadcasted_iota(jnp.int32, loss.shape, 1)
        flat_ids = (row_start + row_ids) * LANES + lane_ids
        loss = jnp.where(flat_ids < total_count, loss, 0.0)

    # Fold the block down to one vreg-shaped (8, 128) partial (pure VPU adds)
    # and accumulate into the per-core resident output block.
    acc_ref[0] += loss.reshape(block_rows // 8, 8, LANES).sum(axis=0)


def bce_focal_loss(preds, targets, alpha=ALPHA, gamma=GAMMA):
    assert preds.shape == targets.shape
    total = preds.size

    # Sublane alignment: 8 rows for 4-byte dtypes, 16 for 2-byte (bf16) inputs.
    align = max(8, 8 * (4 // jnp.dtype(preds.dtype).itemsize),
                8 * (4 // jnp.dtype(targets.dtype).itemsize))

    rows = -(-total // LANES)
    block_rows = min(MAX_BLOCK_ROWS, _round_up(-(-rows // NCORES), align))
    padded_rows = _round_up(rows, NCORES * block_rows)
    padded_total = padded_rows * LANES
    k_steps = padded_rows // (NCORES * block_rows)

    flat_p = preds.reshape(-1)
    flat_t = targets.reshape(-1)
    if padded_total != total:
        flat_p = jnp.pad(flat_p, (0, padded_total - total))
        flat_t = jnp.pad(flat_t, (0, padded_total - total))
    p2d = flat_p.reshape(padded_rows, LANES)
    t2d = flat_t.reshape(padded_rows, LANES)

    kernel = functools.partial(
        _focal_kernel, alpha=float(alpha), gamma=float(gamma),
        total_count=int(total), padded_count=int(padded_total),
        block_rows=int(block_rows))

    in_map = lambda c, k: (c * k_steps + k, 0)

    partials = pl.pallas_call(
        kernel,
        out_shape=jax.ShapeDtypeStruct((NCORES, 8, LANES), jnp.float32),
        grid_spec=pltpu.PrefetchScalarGridSpec(
            num_scalar_prefetch=0,
            grid=(NCORES, k_steps),
            in_specs=[
                pl.BlockSpec((block_rows, LANES), in_map),
                pl.BlockSpec((block_rows, LANES), in_map),
            ],
            out_specs=pl.BlockSpec((1, 8, LANES), lambda c, k: (c, 0, 0)),
        ),
        compiler_params=pltpu.CompilerParams(
            dimension_semantics=("parallel", "arbitrary")),
    )(p2d, t2d)

    # Tiny finalize (2*8*128 floats) in plain XLA.
    return jnp.sum(partials) / float(total)


def _reference(preds, targets, alpha=ALPHA, gamma=GAMMA):
    x = preds.astype(jnp.float32)
    t = targets.astype(jnp.float32)
    bce = jnp.maximum(x, 0.0) - x * t + jnp.log1p(jnp.exp(-jnp.abs(x)))
    p = jax.nn.sigmoid(x)
    loss = t * alpha * (1.0 - p) ** gamma * bce + (1.0 - t) * p ** gamma * bce
    return jnp.mean(loss)


if __name__ == "__main__":
    key = jax.random.PRNGKey(0)
    kp, kt = jax.random.split(key)

    # NCHW-style logits, binary targets (size is a multiple of 8*128)
    preds = jax.random.normal(kp, (2, 4, 16, 16), dtype=jnp.float32) * 2.0
    targets = (jax.random.uniform(kt, (2, 4, 16, 16)) > 0.5).astype(jnp.float32)
    out = jax.block_until_ready(bce_focal_loss(preds, targets))
    ref = _reference(preds, targets)
    assert jnp.allclose(out, ref, rtol=1e-5, atol=1e-6), (out, ref)

    # Odd shape exercises the padding + mask path.
    kp2, kt2 = jax.random.split(jax.random.PRNGKey(1))
    preds2 = jax.random.normal(kp2, (2, 3, 15, 17), dtype=jnp.float32) * 2.0
    targets2 = (jax.random.uniform(kt2, (2, 3, 15, 17)) > 0.5).astype(jnp.float32)
    out2 = jax.block_until_ready(bce_focal_loss(preds2, targets2))
    ref2 = _reference(preds2, targets2)
    assert jnp.allclose(out2, ref2, rtol=1e-5, atol=1e-6), (out2, ref2)

    print("KERNEL_OK")
</pallas_src>

<mosaic_0001>
module attributes {stable_mosaic.version = 11 : i64} {
  func.func @_focal_kernel(%arg0: i32, %arg1: i32, %arg2: memref<8x128xf32, #tpu.memory_space<vmem>>, %arg3: memref<8x128xf32, #tpu.memory_space<vmem>>, %arg4: memref<1x8x128xf32, #tpu.memory_space<vmem>>) attributes {dimension_semantics = [#tpu.dimension_semantics<parallel>, #tpu.dimension_semantics<arbitrary>], iteration_bounds = array<i64: 2, 1>, scalar_prefetch = 0 : i64, scratch_operands = 0 : i64, tpu.core_type = #tpu.core_type<tc>, window_params = [{transform_indices = @transform_0, window_bounds = array<i64: 8, 128>}, {transform_indices = @transform_1, window_bounds = array<i64: 8, 128>}, {transform_indices = @transform_2, window_bounds = array<i64: 1, 8, 128>}]} {
    %c0_i32 = arith.constant 0 : i32
    %0 = arith.cmpi eq, %arg1, %c0_i32 : i32
    %1 = arith.extui %0 : i1 to i32
    %c0_i32_0 = arith.constant 0 : i32
    %2 = arith.cmpi ne, %1, %c0_i32_0 : i32
    scf.if %2 {
      %cst_17 = arith.constant 0.000000e+00 : f32
      %42 = vector.broadcast %cst_17 : f32 to vector<1x8x128xf32>
      %c0_18 = arith.constant 0 : index
      %c0_19 = arith.constant 0 : index
      %c0_20 = arith.constant 0 : index
      %43 = vector.load %arg4[%c0_18, %c0_19, %c0_20] : memref<1x8x128xf32, #tpu.memory_space<vmem>>, vector<1x8x128xf32>
      tpu.vector_store %arg4[%c0_18, %c0_19, %c0_20], %42 {strides = array<i32>} : memref<1x8x128xf32, #tpu.memory_space<vmem>>, vector<1x8x128xf32>,
    } else {
    }
    %c0 = arith.constant 0 : index
    %c0_1 = arith.constant 0 : index
    %3 = vector.load %arg2[%c0, %c0_1] : memref<8x128xf32, #tpu.memory_space<vmem>>, vector<8x128xf32>
    %c0_2 = arith.constant 0 : index
    %c0_3 = arith.constant 0 : index
    %4 = vector.load %arg3[%c0_2, %c0_3] : memref<8x128xf32, #tpu.memory_space<vmem>>, vector<8x128xf32>
    %5 = math.absf %3 : vector<8x128xf32>
    %cst = arith.constant 0.000000e+00 : f32
    %6 = vector.broadcast %cst : f32 to vector<8x128xf32>
    %7 = arith.subf %6, %5 : vector<8x128xf32>
    %8 = math.exp %7 : vector<8x128xf32>
    %cst_4 = arith.constant 0.000000e+00 : f32
    %9 = vector.broadcast %cst_4 : f32 to vector<8x128xf32>
    %10 = arith.maximumf %3, %9 : vector<8x128xf32>
    %11 = arith.mulf %3, %4 : vector<8x128xf32>
    %12 = arith.subf %10, %11 : vector<8x128xf32>
    %13 = math.log1p %8 : vector<8x128xf32>
    %14 = arith.addf %12, %13 : vector<8x128xf32>
    %cst_5 = arith.constant 1.000000e+00 : f32
    %15 = vector.broadcast %cst_5 : f32 to vector<8x128xf32>
    %16 = arith.addf %15, %8 : vector<8x128xf32>
    %17 = tpu.reciprocal %16 : vector<8x128xf32> -> vector<8x128xf32>
    %cst_6 = arith.constant 0.000000e+00 : f32
    %18 = vector.broadcast %cst_6 : f32 to vector<8x128xf32>
    %19 = arith.cmpf oge, %3, %18 : vector<8x128xf32>
    %20 = arith.mulf %8, %17 : vector<8x128xf32>
    %21 = arith.select %19, %17, %20 : vector<8x128xi1>, vector<8x128xf32>
    %cst_7 = arith.constant 1.000000e+00 : f32
    %22 = vector.broadcast %cst_7 : f32 to vector<8x128xf32>
    %23 = arith.subf %22, %21 : vector<8x128xf32>
    %24 = arith.mulf %21, %21 : vector<8x128xf32>
    %25 = arith.mulf %23, %23 : vector<8x128xf32>
    %cst_8 = arith.constant 2.500000e-01 : f32
    %26 = vector.broadcast %cst_8 : f32 to vector<8x128xf32>
    %27 = arith.mulf %4, %26 : vector<8x128xf32>
    %28 = arith.mulf %27, %25 : vector<8x128xf32>
    %cst_9 = arith.constant 1.000000e+00 : f32
    %29 = vector.broadcast %cst_9 : f32 to vector<8x128xf32>
    %30 = arith.subf %29, %4 : vector<8x128xf32>
    %31 = arith.mulf %30, %24 : vector<8x128xf32>
    %32 = arith.addf %28, %31 : vector<8x128xf32>
    %33 = arith.mulf %14, %32 : vector<8x128xf32>
    %c0_10 = arith.constant 0 : index
    %c0_11 = arith.constant 0 : index
    %c0_12 = arith.constant 0 : index
    %34 = vector.load %arg4[%c0_10, %c0_11, %c0_12] : memref<1x8x128xf32, #tpu.memory_space<vmem>>, vector<1x8x128xf32>
    %35 = vector.shape_cast %34 : vector<1x8x128xf32> to vector<8x128xf32>
    %36 = vector.shape_cast %33 : vector<8x128xf32> to vector<1x8x128xf32>
    %cst_13 = arith.constant dense<0.000000e+00> : vector<8x128xf32>
    %37 = vector.multi_reduction <add>, %36, %cst_13 [0] : vector<1x8x128xf32> to vector<8x128xf32>
    %38 = arith.addf %35, %37 : vector<8x128xf32>
    %c0_14 = arith.constant 0 : index
    %c0_15 = arith.constant 0 : index
    %c0_16 = arith.constant 0 : index
    %39 = vector.load %arg4[%c0_14, %c0_15, %c0_16] : memref<1x8x128xf32, #tpu.memory_space<vmem>>, vector<1x8x128xf32>
    %40 = vector.shape_cast %39 : vector<1x8x128xf32> to vector<8x128xf32>
    %41 = vector.shape_cast %38 : vector<8x128xf32> to vector<1x8x128xf32>
    tpu.vector_store %arg4[%c0_14, %c0_15, %c0_16], %41 {strides = array<i32>} : memref<1x8x128xf32, #tpu.memory_space<vmem>>, vector<1x8x128xf32>,
    return
  }
  func.func @transform_0(%arg0: i32, %arg1: i32) -> (i32, i32) {
    %c1_i32 = arith.constant 1 : i32
    %0 = arith.muli %arg0, %c1_i32 : i32
    %1 = arith.addi %0, %arg1 : i32
    %c0_i32 = arith.constant 0 : i32
    %c0_i32_0 = arith.constant 0 : i32
    return %1, %c0_i32 : i32, i32
  }
  func.func @transform_1(%arg0: i32, %arg1: i32) -> (i32, i32) {
    %c1_i32 = arith.constant 1 : i32
    %0 = arith.muli %arg0, %c1_i32 : i32
    %1 = arith.addi %0, %arg1 : i32
    %c0_i32 = arith.constant 0 : i32
    %c0_i32_0 = arith.constant 0 : i32
    return %1, %c0_i32 : i32, i32
  }
  func.func @transform_2(%arg0: i32, %arg1: i32) -> (i32, i32, i32) {
    %c0_i32 = arith.constant 0 : i32
    %c0_i32_0 = arith.constant 0 : i32
    %c0_i32_1 = arith.constant 0 : i32
    return %arg0, %c0_i32, %c0_i32_0 : i32, i32, i32
  }
}

</mosaic_0001>

<llo_original>
// kernel: tpu_custom_call.1
$region0: #{tpu_custom_call.1}
  #allocation0 [shape = 'u32[]', space=smem, size = 0x4, offset = 0x4, fixed_abs, tag = 'smem constant byte address 0x4 - core index']
  #allocation1 [shape = 'u32[72,128]{1,0:T(1,128)}', space=vmem, size = 0x9000, scoped, tag = 'internal scratch']
  %s0 = inlined_call_operand.hbm [shape: f32[16,128], index: 0, kind: input, shape index: {}]
  %s1 = inlined_call_operand.hbm [shape: f32[16,128], index: 1, kind: input, shape index: {}]
  %s2 = inlined_call_operand.hbm [shape: f32[2,8,128], index: 2, kind: output, shape index: {}]
  %s3 = sld [smem:[#allocation0]]
  $region53: #{tpu_custom_call.1} parent=0
    _
  %s5 = ssub.s32 1, %s3
  %s6 = scalar_select 0, %s5, %s3
  $region1: #{tpu_custom_call.1} parent=0
    #allocation2 [shape = 'u8[8192]{0}', space=vmem, size = 0x2000, scoped, tag = 'input window, operand 0']
    #allocation3 [shape = 's32[2]{0}', space=sflag, size = 0x8, scoped, tag = 'scoped memory for tpu_custom_call.1']
    #allocation4 [shape = 's32[2]{0}', space=sflag, size = 0x8, scoped, tag = 'scoped memory for tpu_custom_call.1']
    #allocation5 [shape = 'u8[8192]{0}', space=vmem, size = 0x2000, scoped, tag = 'input window, operand 1']
    #allocation6 [shape = 's32[2]{0}', space=sflag, size = 0x8, scoped, tag = 'scoped memory for tpu_custom_call.1']
    #allocation7 [shape = 'u8[8192]{0}', space=vmem, size = 0x2000, scoped, tag = 'output window, operand 0']
    %7 = vsyncpa [#allocation3], 0
    %s8 = scalar_lea.sflag [#allocation3], 1
    %9 = vsyncpa %s8, 0
    %10 = vsyncpa [#allocation6], 0
    %s11 = scalar_lea.sflag [#allocation6], 1
    %12 = vsyncpa %s11, 0
    %13 = vsyncpa [#allocation4], 0
    %s14 = scalar_lea.sflag [#allocation4], 1
    %15 = vsyncpa %s14, 0
    loop: start=0, step=1, limit=4
    $region2: #{tpu_custom_call.1} parent=1 // loop_pre_header
      _
    $region3: #{tpu_custom_call.1} parent=1 // loop_header
      %s17 = sphi 0, %s21
      %p18 = scmp.ge.s32.totalorder %s17, 4
      %s24 = sphi 0, %s36
      %s25 = sphi 0, %s32
      %s26 = sphi 0, %s24
      %s27 = sphi 0, %s25
      %s28 = sphi 0, %s26
      %s29 = sphi 0, %s27
      %s41 = sphi 0, %s43
      %s44 = sphi 0, %s41
      %s45 = sphi 0, %s44
      %s61 = sphi 0, %s45
      %s69 = sphi 0, %s71
      %s72 = sphi 0, %s69
      %s73 = sphi 0, %s72
      %s89 = sphi 0, %s73
      %s95 = sphi 0, %s97
      %s98 = sphi 0, %s95
      %s99 = sphi 0, %s98
      %s115 = sphi 0, %s99
    $region4: #{tpu_custom_call.1} parent=1 // loop_header_branch
      %20 = sbr.rel (%p18) target = $region8
    $region5: #{tpu_custom_call.1} parent=1 // loop_body
      %s22 = ssub.s32 %s17, 1
      %s23 = ssub.s32 %s17, 2
      %s30 = sadd.s32 1, %s25
      %p31 = scmp.ge.s32.totalorder %s30, 1
      %s32 = scalar_select %p31, 0, %s30
      %s33 = sadd.s32 1, %s24
      %s34 = scalar_select %p31, %s33, %s24
      %p35 = scmp.ge.s32.totalorder %s34, 2
      %s36 = scalar_select %p35, 0, %s34
      %s37 = sadd.s32 %s24, %s25
      %s38 = sadd.s32 %s36, %s32
      %s39 = ssub.s32 %s37, %s38
      %p40 = scmp.eq.s32.totalorder %s39, 0
      %s42 = sadd.s32 %s41, 1
      %s43 = scalar_select %p40, %s41, %s42
      %p46 = pneg %p40
      %p47 = scmp.eq.s32.totalorder %s17, 1
      %p48 = por %p46, %p47
      %p49 = scmp.ne.s32.totalorder %s41, %s44
      %p50 = scmp.eq.s32.totalorder %s17, 0
      %p51 = por %p49, %p50
      %p52 = scmp.ne.s32.totalorder %s41, %s44
      %p53 = scmp.eq.s32.totalorder %s22, 1
      %p54 = por %p52, %p53
      %p55 = scmp.ne.s32.totalorder %s44, %s45
      %p56 = scmp.eq.s32.totalorder %s22, 0
      %p57 = por %p55, %p56
      %p58 = scmp.ne.s32.totalorder %s44, %s45
      %p59 = scmp.eq.s32.totalorder %s23, 1
      %p60 = por %p58, %p59
      %p62 = scmp.ne.s32.totalorder %s45, %s61
      %p63 = scmp.eq.s32.totalorder %s23, 0
      %p64 = por %p62, %p63
      %s65 = sadd.s32 %s24, %s25
      %s66 = sadd.s32 %s36, %s32
      %s67 = ssub.s32 %s65, %s66
      %p68 = scmp.eq.s32.totalorder %s67, 0
      %s70 = sadd.s32 %s69, 1
      %s71 = scalar_select %p68, %s69, %s70
      %p74 = pneg %p68
      %p75 = scmp.eq.s32.totalorder %s17, 1
      %p76 = por %p74, %p75
      %p77 = scmp.ne.s32.totalorder %s69, %s72
      %p78 = scmp.eq.s32.totalorder %s17, 0
      %p79 = por %p77, %p78
      %p80 = scmp.ne.s32.totalorder %s69, %s72
      %p81 = scmp.eq.s32.totalorder %s22, 1
      %p82 = por %p80, %p81
      %p83 = scmp.ne.s32.totalorder %s72, %s73
      %p84 = scmp.eq.s32.totalorder %s22, 0
      %p85 = por %p83, %p84
      %p86 = scmp.ne.s32.totalorder %s72, %s73
      %p87 = scmp.eq.s32.totalorder %s23, 1
      %p88 = por %p86, %p87
      %p90 = scmp.ne.s32.totalorder %s73, %s89
      %p91 = scmp.eq.s32.totalorder %s23, 0
      %p92 = por %p90, %p91
      %s93 = ssub.s32 %s24, %s36
      %p94 = scmp.eq.s32.totalorder %s93, 0
      %s96 = sadd.s32 %s95, 1
      %s97 = scalar_select %p94, %s95, %s96
      %p100 = pneg %p94
      %p101 = scmp.eq.s32.totalorder %s17, 1
      %p102 = por %p100, %p101
      %p103 = scmp.ne.s32.totalorder %s95, %s98
      %p104 = scmp.eq.s32.totalorder %s17, 0
      %p105 = por %p103, %p104
      %p106 = scmp.ne.s32.totalorder %s95, %s98
      %p107 = scmp.eq.s32.totalorder %s22, 1
      %p108 = por %p106, %p107
      %p109 = scmp.ne.s32.totalorder %s98, %s99
      %p110 = scmp.eq.s32.totalorder %s22, 0
      %p111 = por %p109, %p110
      %p112 = scmp.ne.s32.totalorder %s98, %s99
      %p113 = scmp.eq.s32.totalorder %s23, 1
      %p114 = por %p112, %p113
      %p116 = scmp.ne.s32.totalorder %s99, %s115
      %p117 = scmp.eq.s32.totalorder %s23, 0
      %p118 = por %p116, %p117
      %p119 = scmp.le.s32.totalorder 1, %s17
      %p120 = scmp.lt.s32.totalorder %s17, 3
      %p121 = pnand %p119, %p120
      %p122 = pneg %p121
      // Predicated region
      $region9: #{tpu_custom_call.1} parent=5 // pred_check
        _
      $region10: #{tpu_custom_call.1} parent=5 // pred_check_branch
        %124 = sbr.rel (%p121) target = $region12
      $region11: #{tpu_custom_call.1} parent=5 // pred_region
        %s125 = ssub.s32 %s17, 1
      $region12: #{tpu_custom_call.1} parent=5 // pred_fallthru
        _
      %p126 = scmp.lt.s32.totalorder %s17, 2
      // Predicated region
      $region13: #{tpu_custom_call.1} parent=5 // pred_check
        %p127 = pneg %p126
      $region14: #{tpu_custom_call.1} parent=5 // pred_check_branch
        %129 = sbr.rel (%p127) target = $region16
      $region15: #{tpu_custom_call.1} parent=5 // pred_region
        // Predicated region
        $region17: #{tpu_custom_call.1} parent=15 // pred_check
          %p130 = pneg %p51
        $region18: #{tpu_custom_call.1} parent=15 // pred_check_branch
          %132 = sbr.rel (%p130) target = $region20
        $region19: #{tpu_custom_call.1} parent=15 // pred_region
          %s133 = sand.u32 %s41, 1
          %s134 = scalar_lea.sflag [#allocation3], %s133
          %s135 = sand.u32 %s41, 1
          %s136 = smul.addr %s135, 8
          %s137 = scalar_lea.vmem [#allocation2], %s136
          %s138 = sadd.s32 %s24, %s25
          %140 = vsyncadd %s134, 0
          %s141 = smul.addr %s138, 8
          %s142 = scalar_lea.hbm %s0, %s141
          %s144 = sshll.u32 %s142, 4
          %s145 = int_to_ptr.hbm [resolvable:$true] %s144
          %s146 = sshll.u32 %s137, 4
          %s147 = int_to_ptr.vmem [resolvable:$true] %s146
          %149 = dma.hbm_to_vmem [thread:$0]  %s145, 128, %s147, %s134
        $region20: #{tpu_custom_call.1} parent=15 // pred_fallthru
          _
        // Predicated region
        $region21: #{tpu_custom_call.1} parent=15 // pred_check
          %p150 = pneg %p79
        $region22: #{tpu_custom_call.1} parent=15 // pred_check_branch
          %152 = sbr.rel (%p150) target = $region24
        $region23: #{tpu_custom_call.1} parent=15 // pred_region
          %s153 = sand.u32 %s69, 1
          %s154 = scalar_lea.sflag [#allocation6], %s153
          %s155 = sand.u32 %s69, 1
          %s156 = smul.addr %s155, 8
          %s157 = scalar_lea.vmem [#allocation5], %s156
          %s158 = sadd.s32 %s24, %s25
          %160 = vsyncadd %s154, 0
          %s161 = smul.addr %s158, 8
          %s162 = scalar_lea.hbm %s1, %s161
          %s164 = sshll.u32 %s162, 4
          %s165 = int_to_ptr.hbm [resolvable:$true] %s164
          %s166 = sshll.u32 %s157, 4
          %s167 = int_to_ptr.vmem [resolvable:$true] %s166
          %169 = dma.hbm_to_vmem [thread:$0]  %s165, 128, %s167, %s154
        $region24: #{tpu_custom_call.1} parent=15 // pred_fallthru
          _
      $region16: #{tpu_custom_call.1} parent=5 // pred_fallthru
        _
      %p170 = scmp.le.s32.totalorder 1, %s17
      %p171 = scmp.lt.s32.totalorder %s17, 3
      %p172 = pnand %p170, %p171
      %p173 = pneg %p172
      // Predicated region
      $region25: #{tpu_custom_call.1} parent=5 // pred_check
        _
      $region26: #{tpu_custom_call.1} parent=5 // pred_check_branch
        %175 = sbr.rel (%p172) target = $region28
      $region27: #{tpu_custom_call.1} parent=5 // pred_region
        %s176 = ssub.s32 %s17, 1
        %s177 = sand.u32 %s44, 1
        %s178 = scalar_lea.sflag [#allocation3], %s177
        %s179 = sand.u32 %s44, 1
        %s180 = smul.addr %s179, 8
        %s181 = scalar_lea.vmem [#allocation2], %s180
        // Predicated region
        $region29: #{tpu_custom_call.1} parent=27 // pred_check
          %p182 = pneg %p57
        $region30: #{tpu_custom_call.1} parent=27 // pred_check_branch
          %184 = sbr.rel (%p182) target = $region32
        $region31: #{tpu_custom_call.1} parent=27 // pred_region
          %186 = dma.done %s178, 128
        $region32: #{tpu_custom_call.1} parent=27 // pred_fallthru
          _
        %s187 = sand.u32 %s72, 1
        %s188 = scalar_lea.sflag [#allocation6], %s187
        %s189 = sand.u32 %s72, 1
        %s190 = smul.addr %s189, 8
        %s191 = scalar_lea.vmem [#allocation5], %s190
        // Predicated region
        $region33: #{tpu_custom_call.1} parent=27 // pred_check
          %p192 = pneg %p85
        $region34: #{tpu_custom_call.1} parent=27 // pred_check_branch
          %194 = sbr.rel (%p192) target = $region36
        $region35: #{tpu_custom_call.1} parent=27 // pred_region
          %196 = dma.done %s188, 128
        $region36: #{tpu_custom_call.1} parent=27 // pred_fallthru
          _
        %s197 = sand.u32 %s44, 1
        %s198 = scalar_lea.sflag [#allocation3], %s197
        %s199 = sand.u32 %s44, 1
        %s200 = smul.addr %s199, 8
        %s201 = scalar_lea.vmem [#allocation2], %s200
        %p202 = pneg %p57
        %p203 = pneg %p54
        %s204 = sand.u32 %s72, 1
        %s205 = scalar_lea.sflag [#allocation6], %s204
        %s206 = sand.u32 %s72, 1
        %s207 = smul.addr %s206, 8
        %s208 = scalar_lea.vmem [#allocation5], %s207
        %p209 = pneg %p85
        %p210 = pneg %p82
        %p211 = pneg %p111
        %p212 = pneg %p108
        %s213 = sand.u32 %s98, 1
        %s214 = scalar_lea.sflag [#allocation4], %s213
        %s215 = sand.u32 %s98, 1
        %s216 = smul.addr %s215, 8
        %s217 = scalar_lea.vmem [#allocation7], %s216
        %s218 = sadd.s32 %s26, %s27
        %s219 = sadd.s32 %s26, %s27
        %p220 = scmp.eq.s32.totalorder %s27, 0
        // Predicated region
        $region37: #{tpu_custom_call.1} parent=27 // pred_check
          %p221 = pneg %p220
        $region38: #{tpu_custom_call.1} parent=27 // pred_check_branch
          %223 = sbr.rel (%p221) target = $region40
        $region39: #{tpu_custom_call.1} parent=27 // pred_region
          %224 = vst [vmem:[%s217] sm:$0xff] 0.0
        $region40: #{tpu_custom_call.1} parent=27 // pred_fallthru
          _
        %v225 = vld [vmem:[%s181] sm:$0xff]
        %v226 = vld [vmem:[%s191] sm:$0xff]
        %v227 = vand.u32 2147483647, %v225
        %v228 = vsub.f32 0.0, %v227
        %v229 = vmul.f32 %v228, 1.442695
        %v230 = vpow.pop %v229
        %v231 = vmax.f32 %v225, 0.0
        %v232 = vmul.f32 %v225, %v226
        %v233 = vsub.f32 %v231, %v232
        %v234 = vadd.f32 %v230, 1.0
        %v235 = vlog2.pop %v234
        %v236 = vmul.f32 %v235, 0.6931472
        %v237 = vmul.f32 -0.5, %v230
        %v238 = vadd.f32 %v237, 1.0
        %v239 = vmul.f32 %v238, %v230
        %v240 = vand.u32 2147483647, %v230
        %vm241 = vcmp.lt.f32.partialorder %v240, 0.0004427343
        %v242 = vsel %vm241, %v239, %v236
        %v243 = vadd.f32 %v233, %v242
        %v244 = vadd.f32 %v230, 1.0
        %v245 = vrcp.pop %v244
        %v246 = vmul.f32 %v244, %v245
        %v247 = vsub.f32 1.0, %v246
        %v248 = vmul.f32 %v245, %v247
        %v249 = vadd.f32 %v245, %v248
        %vm250 = vweird.f32 %v244
        %vm251 = vweird.f32 %v245
        %vm252 = vmor %vm250, %vm251
        %v253 = vsel %vm252, %v245, %v249
        %v254 = vand.u32 2147483647, %v244
        %vm255 = vcmp.eq.f32.partialorder %v254, 8.507059e+37
        %v256 = vand.u32 %v244, 2147483648
        %v257 = vor.u32 1.1754944e-38, %v256
        %v258 = vsel %vm255, %v257, %v253
        %vm259 = vcmp.ge.f32.partialorder %v225, 0.0
        %v260 = vmul.f32 %v230, %v258
        %v261 = vsel %vm259, %v258, %v260
        %v262 = vsub.f32 1.0, %v261
        %v263 = vmul.f32 %v261, %v261
        %v264 = vmul.f32 %v262, %v262
        %v265 = vmul.f32 %v226, 0.25
        %v266 = vmul.f32 %v265, %v264
        %v267 = vsub.f32 1.0, %v226
        %v268 = vmul.f32 %v267, %v263
        %v269 = vadd.f32 %v266, %v268
        %v270 = vmul.f32 %v243, %v269
        %v271 = vld [vmem:[%s217] sm:$0xff]
        %v272 = vadd.f32 %v270, 0.0
        %v273 = vadd.f32 %v271, %v272
        %274 = vst [vmem:[%s217] sm:$0xff] %v273
        %s275 = sand.u32 %s98, 1
        %s276 = scalar_lea.sflag [#allocation4], %s275
        %s277 = sand.u32 %s98, 1
        %s278 = smul.addr %s277, 8
        %s279 = scalar_lea.vmem [#allocation7], %s278
        // Predicated region
        $region41: #{tpu_custom_call.1} parent=27 // pred_check
          %p280 = pneg %p108
        $region42: #{tpu_custom_call.1} parent=27 // pred_check_branch
          %282 = sbr.rel (%p280) target = $region44
        $region43: #{tpu_custom_call.1} parent=27 // pred_region
          %284 = vsyncadd %s276, 0
          %s285 = smul.addr %s26, 8
          %s286 = scalar_lea.hbm %s2, %s285
          %s288 = sshll.u32 %s279, 4
          %s289 = int_to_ptr.vmem [resolvable:$true] %s288
          %s290 = sshll.u32 %s286, 4
          %s291 = int_to_ptr.hbm [resolvable:$true] %s290
          %293 = dma.vmem_to_hbm [thread:$0]  %s289, 128, %s291, %s276
        $region44: #{tpu_custom_call.1} parent=27 // pred_fallthru
          _
      $region28: #{tpu_custom_call.1} parent=5 // pred_fallthru
        _
      %p294 = scmp.le.s32.totalorder 2, %s17
      // Predicated region
      $region45: #{tpu_custom_call.1} parent=5 // pred_check
        %p295 = pneg %p294
      $region46: #{tpu_custom_call.1} parent=5 // pred_check_branch
        %297 = sbr.rel (%p295) target = $region48
      $region47: #{tpu_custom_call.1} parent=5 // pred_region
        %s298 = ssub.s32 %s17, 2
        // Predicated region
        $region49: #{tpu_custom_call.1} parent=47 // pred_check
          %p299 = pneg %p114
        $region50: #{tpu_custom_call.1} parent=47 // pred_check_branch
          %301 = sbr.rel (%p299) target = $region52
        $region51: #{tpu_custom_call.1} parent=47 // pred_region
          %s302 = sand.u32 %s99, 1
          %s303 = scalar_lea.sflag [#allocation4], %s302
          %s304 = sand.u32 %s99, 1
          %s305 = smul.addr %s304, 8
          %s306 = scalar_lea.vmem [#allocation7], %s305
          %308 = dma.done %s303, 128
        $region52: #{tpu_custom_call.1} parent=47 // pred_fallthru
          _
      $region48: #{tpu_custom_call.1} parent=5 // pred_fallthru
        _
    $region6: #{tpu_custom_call.1} parent=1 // loop_footer
      %s21 = sadd.s32 1, %s17
    $region7: #{tpu_custom_call.1} parent=1 // loop_footer_branch
      %16 = sbr.rel target = $region3
    $region8: #{tpu_custom_call.1} parent=1 // loop_exit
      _
    %309 = vsyncpa [#allocation3], 1
    %s310 = scalar_lea.sflag [#allocation3], 1
    %311 = vsyncpa %s310, 1
    %312 = vsyncpa [#allocation6], 1
    %s313 = scalar_lea.sflag [#allocation6], 1
    %314 = vsyncpa %s313, 1
    %315 = vsyncpa [#allocation4], 1
    %s316 = scalar_lea.sflag [#allocation4], 1
    %317 = vsyncpa %s316, 1

</llo_original>
